<compile_context>
chip_gen: v5e
topology: v5e:2x2
jax: 0.10.0
libtpu: 0.0.40
codegen_flags: <defaults>
</compile_context>

<pallas_src>
import functools

import jax
import jax.numpy as jnp
from jax import lax
from jax.experimental import pallas as pl
from jax.experimental.pallas import tpu as pltpu


def _feature_compare_kernel(x_ref, y_ref, o_ref, l_acc, d_acc, y_cache,
                            *, inv_t, n_valid, tile):
    j = pl.program_id(0)          # column block of s (parallel axis)
    i = pl.program_id(1)          # row block of s (reduction axis, last / arbitrary)

    @pl.when(i == 0)
    def _init():
        l_acc[...] = jnp.zeros_like(l_acc)
        d_acc[...] = jnp.zeros_like(d_acc)
        # The y block is resident across the whole i sweep: normalize it once per
        # column block (f32 math, cached in the MXU input dtype).
        yf = y_ref[...].astype(jnp.float32)
        y_cache[...] = (
            yf * lax.rsqrt(jnp.sum(yf * yf, axis=1, keepdims=True))
        ).astype(y_cache.dtype)

    xf = x_ref[...].astype(jnp.float32)
    # Row-normalize x in f32; fold 1/t into the scale (rsqrt -> EUP slot).
    x_scl = (
        xf * (lax.rsqrt(jnp.sum(xf * xf, axis=1, keepdims=True)) * inv_t)
    ).astype(x_ref.dtype)

    # s[row, col] for this (i, j) block.  MXU runs in the input dtype, accumulates
    # f32.  NT contraction (dim 1 of both) -> no materialized transpose of y.
    s = lax.dot_general(
        x_scl, y_cache[...], (((1,), (1,)), ((), ())),
        preferred_element_type=jnp.float32)              # (tile, tile)

    # Static-max logsumexp: s in [-1/t, 1/t] so exp(s - 1/t) in (0, 1]; no online
    # max, no rescale, no loop-carried dependency.
    p = jnp.exp(s - inv_t)
    if n_valid % tile != 0:
        # Padding exists: mask padded rows out of the denominator sum.  (Compiled
        # only when N was padded; padded rows are unit vectors so no NaNs here.)
        rows = lax.broadcasted_iota(jnp.int32, p.shape, 0) + i * tile
        p = jnp.where(rows < n_valid, p, 0.0)
    l_acc[...] += jnp.sum(p, axis=0, keepdims=True)

    # Diagonal entries s[c, c] live only in the i == j block; extract them there in
    # the (1, tile) lane layout.  Fires only 1/n_blk of the iterations.
    @pl.when(i == j)
    def _diag():
        t_sz = s.shape[0]
        r = lax.broadcasted_iota(jnp.int32, (t_sz, t_sz), 0)
        c = lax.broadcasted_iota(jnp.int32, (t_sz, t_sz), 1)
        d_acc[...] = jnp.sum(jnp.where(r == c, s, 0.0), axis=0, keepdims=True)

    @pl.when(i == pl.num_programs(1) - 1)
    def _finalize():
        # per-column loss: logsumexp_i(s[:, c]) - s[c, c] = 1/t + log(l) - d
        o_ref[...] = inv_t + jnp.log(l_acc[...]) - d_acc[...]


def _vmem_plan():
    """Generation-aware (working-set budget, vmem_limit_bytes, tile candidates)."""
    try:
        cap = int(pltpu.get_tpu_info().vmem_capacity_bytes)
    except Exception:
        cap = 64 * 1024 * 1024            # unknown -> be conservative (v7x sizing)
    if cap >= 128 * 1024 * 1024:          # v5e / v6e: use the larger VMEM
        return 80 * 1024 * 1024, 100 * 1024 * 1024, (2048, 1024, 512, 256, 128)
    # v7x: 64 MiB/TC -> leave headroom for compiler-internal scratch & semaphores.
    return 40 * 1024 * 1024, 52 * 1024 * 1024, (1024, 512, 256, 128)


def _vmem_estimate(tile, d, in_bytes):
    """Working-set estimate: double-buffered inputs, scratch, f32 copies, temps."""
    dbl_inputs = 2 * 2 * tile * d * in_bytes     # x & y blocks, double-buffered
    out_dbl = 2 * 1 * tile * 4                   # (1, tile) f32 output, 2 buffers
    scratch = tile * d * in_bytes + 2 * tile * 4 # y cache + l_acc + d_acc
    f32_copies = 4 * tile * d * 4                # x/y f32 copies + scaled versions
    tt_temps = 3 * tile * tile * 4               # s, exp(s - 1/t), masked copy
    return dbl_inputs + out_dbl + scratch + f32_copies + tt_temps


def feature_compare(x, y, t=0.07, max_tile=2048):
    """x, y: (N, D) float arrays (f32 or bf16). Returns scalar f32 loss."""
    assert x.ndim == 2 and x.shape == y.shape
    n, d = x.shape
    in_bytes = max(jnp.dtype(x.dtype).itemsize, jnp.dtype(y.dtype).itemsize)

    budget, vmem_limit, candidates = _vmem_plan()

    # Pad N up to a multiple of 128 with unit rows (normalize cleanly, no NaN); the
    # kernel masks padded rows out of the denominator and the wrapper slices the
    # padded columns off before the mean.  No whole-array fallback.
    n_p = ((n + 127) // 128) * 128
    if n_p != n:
        pad = n_p - n
        pad_x = jnp.zeros((pad, d), dtype=x.dtype).at[:, 0].set(1)
        pad_y = jnp.zeros((pad, d), dtype=y.dtype).at[:, 0].set(1)
        x = jnp.concatenate([x, pad_x], axis=0)
        y = jnp.concatenate([y, pad_y], axis=0)

    tile = 128
    for cand in candidates:
        if cand <= max_tile and n_p % cand == 0 and \
                _vmem_estimate(cand, d, in_bytes) <= budget:
            tile = cand
            break
    n_blk = n_p // tile
    # TODO(synk): on v5e, sweep pipeline_mode=pl.Buffered(3) on the x BlockSpec for
    # small-D problems where the thin x DMA gets exposed.

    kernel = functools.partial(
        _feature_compare_kernel, inv_t=float(1.0 / t), n_valid=n, tile=tile)

    per_col = pl.pallas_call(
        kernel,
        out_shape=jax.ShapeDtypeStruct((1, n_p), jnp.float32),
        grid_spec=pltpu.PrefetchScalarGridSpec(
            num_scalar_prefetch=0,
            grid=(n_blk, n_blk),                                # (j parallel, i last)
            in_specs=[
                pl.BlockSpec((tile, d), lambda j, i: (i, 0)),   # x rows -> rows of s
                pl.BlockSpec((tile, d), lambda j, i: (j, 0)),   # y rows -> cols of s
            ],
            out_specs=pl.BlockSpec((1, tile), lambda j, i: (0, j)),
            scratch_shapes=[
                pltpu.VMEM((1, tile), jnp.float32),   # running sum of exp(s - 1/t)
                pltpu.VMEM((1, tile), jnp.float32),   # diagonal s[c, c]
                pltpu.VMEM((tile, d), y.dtype),       # normalized y block (i-invariant)
            ],
        ),
        compiler_params=pltpu.CompilerParams(
            dimension_semantics=("parallel", "arbitrary"),
            vmem_limit_bytes=vmem_limit),
    )(x, y)

    loss = jnp.mean(per_col[0, :n])
    # NaN guard mirrors PyTorch's `if torch.isnan(los): return 0.0`
    # (e.g. an all-zero row makes the normalization NaN).
    # TODO(synk): PyTorch also prints diagnostics on NaN; only the value is reproduced.
    return jnp.where(jnp.isnan(loss), jnp.float32(0.0), loss)


def feature_compare_ref(x, y, t=0.07):
    """Pure-JAX reference mirroring the PyTorch module."""
    x = x.astype(jnp.float32)
    y = y.astype(jnp.float32)
    x = x / jnp.linalg.norm(x, axis=1, keepdims=True)
    y = y / jnp.linalg.norm(y, axis=1, keepdims=True)
    temp = jnp.exp((x @ y.T) / t)
    los = jnp.mean(-jnp.log(jnp.diag(temp) / jnp.sum(temp, axis=0)))
    return jnp.where(jnp.isnan(los), 0.0, los)


if __name__ == "__main__":
    key = jax.random.PRNGKey(0)
    kx, ky, kx2, ky2 = jax.random.split(key, 4)

    # Small problem consistent with the module: batch N=8 features, hidden D=32.
    n, dim = 8, 32
    x = jax.random.normal(kx, (n, dim), dtype=jnp.float32)
    y = jax.random.normal(ky, (n, dim), dtype=jnp.float32)
    loss = jax.block_until_ready(feature_compare(x, y, t=0.07))
    ref = jax.block_until_ready(feature_compare_ref(x, y, t=0.07))
    assert jnp.allclose(loss, ref, rtol=1e-3, atol=1e-3), (loss, ref)

    # Non-divisible N: exercises padding, the row mask, and a 2x2 streamed grid.
    n2, d2 = 200, 32
    x2 = jax.random.normal(kx2, (n2, d2), dtype=jnp.float32)
    y2 = jax.random.normal(ky2, (n2, d2), dtype=jnp.float32)
    loss2 = jax.block_until_ready(feature_compare(x2, y2, t=0.07, max_tile=128))
    ref2 = jax.block_until_ready(feature_compare_ref(x2, y2, t=0.07))
    assert jnp.allclose(loss2, ref2, rtol=1e-3, atol=1e-3), (loss2, ref2)

    print("KERNEL_OK")
</pallas_src>

<mosaic_0001>
module attributes {stable_mosaic.version = 11 : i64} {
  func.func @_feature_compare_kernel(%arg0: i32, %arg1: i32, %arg2: memref<128x32xf32, #tpu.memory_space<vmem>>, %arg3: memref<128x32xf32, #tpu.memory_space<vmem>>, %arg4: memref<1x128xf32, #tpu.memory_space<vmem>>, %arg5: memref<1x128xf32, #tpu.memory_space<vmem>>, %arg6: memref<1x128xf32, #tpu.memory_space<vmem>>, %arg7: memref<128x32xf32, #tpu.memory_space<vmem>>) attributes {dimension_semantics = [#tpu.dimension_semantics<parallel>, #tpu.dimension_semantics<arbitrary>], iteration_bounds = array<i64: 1, 1>, scalar_prefetch = 0 : i64, scratch_operands = 3 : i64, tpu.core_type = #tpu.core_type<tc>, window_params = [{transform_indices = @transform_0, window_bounds = array<i64: 128, 32>}, {transform_indices = @transform_1, window_bounds = array<i64: 128, 32>}, {transform_indices = @transform_2, window_bounds = array<i64: 1, 128>}]} {
    %c0_i32 = arith.constant 0 : i32
    %0 = arith.cmpi eq, %arg1, %c0_i32 : i32
    %1 = arith.extui %0 : i1 to i32
    %c0_i32_0 = arith.constant 0 : i32
    %2 = arith.cmpi ne, %1, %c0_i32_0 : i32
    scf.if %2 {
      %cst_16 = arith.constant 0.000000e+00 : f32
      %36 = vector.broadcast %cst_16 : f32 to vector<1x128xf32>
      %c0_17 = arith.constant 0 : index
      %c0_18 = arith.constant 0 : index
      %37 = vector.load %arg5[%c0_17, %c0_18] : memref<1x128xf32, #tpu.memory_space<vmem>>, vector<1x128xf32>
      tpu.vector_store %arg5[%c0_17, %c0_18], %36 {strides = array<i32>} : memref<1x128xf32, #tpu.memory_space<vmem>>, vector<1x128xf32>,
      %cst_19 = arith.constant 0.000000e+00 : f32
      %38 = vector.broadcast %cst_19 : f32 to vector<1x128xf32>
      %c0_20 = arith.constant 0 : index
      %c0_21 = arith.constant 0 : index
      %39 = vector.load %arg6[%c0_20, %c0_21] : memref<1x128xf32, #tpu.memory_space<vmem>>, vector<1x128xf32>
      tpu.vector_store %arg6[%c0_20, %c0_21], %38 {strides = array<i32>} : memref<1x128xf32, #tpu.memory_space<vmem>>, vector<1x128xf32>,
      %c0_22 = arith.constant 0 : index
      %c0_23 = arith.constant 0 : index
      %40 = vector.load %arg3[%c0_22, %c0_23] : memref<128x32xf32, #tpu.memory_space<vmem>>, vector<128x32xf32>
      %41 = arith.mulf %40, %40 : vector<128x32xf32>
      %cst_24 = arith.constant dense<0.000000e+00> : vector<128xf32>
      %42 = vector.multi_reduction <add>, %41, %cst_24 [1] : vector<128x32xf32> to vector<128xf32>
      %43 = vector.shape_cast %42 : vector<128xf32> to vector<128x1xf32>
      %44 = math.rsqrt %43 : vector<128x1xf32>
      %45 = vector.broadcast %44 : vector<128x1xf32> to vector<128x32xf32>
      %46 = arith.mulf %40, %45 : vector<128x32xf32>
      %c0_25 = arith.constant 0 : index
      %c0_26 = arith.constant 0 : index
      %47 = vector.load %arg7[%c0_25, %c0_26] : memref<128x32xf32, #tpu.memory_space<vmem>>, vector<128x32xf32>
      tpu.vector_store %arg7[%c0_25, %c0_26], %46 {strides = array<i32>} : memref<128x32xf32, #tpu.memory_space<vmem>>, vector<128x32xf32>,
    } else {
    }
    %c0 = arith.constant 0 : index
    %c0_1 = arith.constant 0 : index
    %3 = vector.load %arg2[%c0, %c0_1] : memref<128x32xf32, #tpu.memory_space<vmem>>, vector<128x32xf32>
    %4 = arith.mulf %3, %3 : vector<128x32xf32>
    %cst = arith.constant dense<0.000000e+00> : vector<128xf32>
    %5 = vector.multi_reduction <add>, %4, %cst [1] : vector<128x32xf32> to vector<128xf32>
    %6 = vector.shape_cast %5 : vector<128xf32> to vector<128x1xf32>
    %7 = math.rsqrt %6 : vector<128x1xf32>
    %cst_2 = arith.constant 14.2857141 : f32
    %8 = vector.broadcast %cst_2 : f32 to vector<128x1xf32>
    %9 = arith.mulf %7, %8 : vector<128x1xf32>
    %10 = vector.broadcast %9 : vector<128x1xf32> to vector<128x32xf32>
    %11 = arith.mulf %3, %10 : vector<128x32xf32>
    %c0_3 = arith.constant 0 : index
    %c0_4 = arith.constant 0 : index
    %12 = vector.load %arg7[%c0_3, %c0_4] : memref<128x32xf32, #tpu.memory_space<vmem>>, vector<128x32xf32>
    %cst_5 = arith.constant dense<0.000000e+00> : vector<128x128xf32>
    %13 = tpu.matmul %11, %12, %cst_5 {dimension_numbers = #tpu.dot_dimension_numbers<[1], [1], [0], [0], [0, 0, 1, 0], [], []>} : vector<128x32xf32>, vector<128x32xf32>, vector<128x128xf32> -> vector<128x128xf32>
    %cst_6 = arith.constant 14.2857141 : f32
    %14 = vector.broadcast %cst_6 : f32 to vector<128x128xf32>
    %15 = arith.subf %13, %14 : vector<128x128xf32>
    %16 = math.exp %15 : vector<128x128xf32>
    %17 = tpu.iota {dimensions = array<i32: 0>} : vector<128x128xi32>
    %c128_i32 = arith.constant 128 : i32
    %18 = arith.muli %arg1, %c128_i32 : i32
    %19 = vector.broadcast %18 : i32 to vector<128x128xi32>
    %20 = arith.addi %17, %19 : vector<128x128xi32>
    %c8_i32 = arith.constant 8 : i32
    %21 = vector.broadcast %c8_i32 : i32 to vector<128x128xi32>
    %22 = arith.cmpi slt, %20, %21 : vector<128x128xi32>
    %cst_7 = arith.constant 0.000000e+00 : f32
    %23 = vector.broadcast %cst_7 : f32 to vector<128x128xf32>
    %24 = arith.select %22, %16, %23 : vector<128x128xi1>, vector<128x128xf32>
    %c0_8 = arith.constant 0 : index
    %c0_9 = arith.constant 0 : index
    %25 = vector.load %arg5[%c0_8, %c0_9] : memref<1x128xf32, #tpu.memory_space<vmem>>, vector<1x128xf32>
    %cst_10 = arith.constant dense<0.000000e+00> : vector<128xf32>
    %26 = vector.multi_reduction <add>, %24, %cst_10 [0] : vector<128x128xf32> to vector<128xf32>
    %27 = vector.shape_cast %26 : vector<128xf32> to vector<1x128xf32>
    %28 = arith.addf %25, %27 : vector<1x128xf32>
    %c0_11 = arith.constant 0 : index
    %c0_12 = arith.constant 0 : index
    %29 = vector.load %arg5[%c0_11, %c0_12] : memref<1x128xf32, #tpu.memory_space<vmem>>, vector<1x128xf32>
    tpu.vector_store %arg5[%c0_11, %c0_12], %28 {strides = array<i32>} : memref<1x128xf32, #tpu.memory_space<vmem>>, vector<1x128xf32>,
    %30 = arith.cmpi eq, %arg1, %arg0 : i32
    %31 = arith.extui %30 : i1 to i32
    %c0_i32_13 = arith.constant 0 : i32
    %32 = arith.cmpi ne, %31, %c0_i32_13 : i32
    scf.if %32 {
      %36 = tpu.iota {dimensions = array<i32: 0>} : vector<128x128xi32>
      %37 = tpu.iota {dimensions = array<i32: 1>} : vector<128x128xi32>
      %38 = arith.cmpi eq, %36, %37 : vector<128x128xi32>
      %cst_16 = arith.constant 0.000000e+00 : f32
      %39 = vector.broadcast %cst_16 : f32 to vector<128x128xf32>
      %40 = arith.select %38, %13, %39 : vector<128x128xi1>, vector<128x128xf32>
      %cst_17 = arith.constant dense<0.000000e+00> : vector<128xf32>
      %41 = vector.multi_reduction <add>, %40, %cst_17 [0] : vector<128x128xf32> to vector<128xf32>
      %42 = vector.shape_cast %41 : vector<128xf32> to vector<1x128xf32>
      %c0_18 = arith.constant 0 : index
      %c0_19 = arith.constant 0 : index
      %43 = vector.load %arg6[%c0_18, %c0_19] : memref<1x128xf32, #tpu.memory_space<vmem>>, vector<1x128xf32>
      tpu.vector_store %arg6[%c0_18, %c0_19], %42 {strides = array<i32>} : memref<1x128xf32, #tpu.memory_space<vmem>>, vector<1x128xf32>,
    } else {
    }
    %c0_i32_14 = arith.constant 0 : i32
    %33 = arith.cmpi eq, %arg1, %c0_i32_14 : i32
    %34 = arith.extui %33 : i1 to i32
    %c0_i32_15 = arith.constant 0 : i32
    %35 = arith.cmpi ne, %34, %c0_i32_15 : i32
    scf.if %35 {
      %c0_16 = arith.constant 0 : index
      %c0_17 = arith.constant 0 : index
      %36 = vector.load %arg5[%c0_16, %c0_17] : memref<1x128xf32, #tpu.memory_space<vmem>>, vector<1x128xf32>
      %37 = math.log %36 : vector<1x128xf32>
      %cst_18 = arith.constant 14.2857141 : f32
      %38 = vector.broadcast %cst_18 : f32 to vector<1x128xf32>
      %39 = arith.addf %38, %37 : vector<1x128xf32>
      %c0_19 = arith.constant 0 : index
      %c0_20 = arith.constant 0 : index
      %40 = vector.load %arg6[%c0_19, %c0_20] : memref<1x128xf32, #tpu.memory_space<vmem>>, vector<1x128xf32>
      %41 = arith.subf %39, %40 : vector<1x128xf32>
      %c0_21 = arith.constant 0 : index
      %c0_22 = arith.constant 0 : index
      %42 = vector.load %arg4[%c0_21, %c0_22] : memref<1x128xf32, #tpu.memory_space<vmem>>, vector<1x128xf32>
      tpu.vector_store %arg4[%c0_21, %c0_22], %41 {strides = array<i32>} : memref<1x128xf32, #tpu.memory_space<vmem>>, vector<1x128xf32>,
    } else {
    }
    return
  }
  func.func @transform_0(%arg0: i32, %arg1: i32) -> (i32, i32) {
    %c0_i32 = arith.constant 0 : i32
    %c0_i32_0 = arith.constant 0 : i32
    return %arg1, %c0_i32 : i32, i32
  }
  func.func @transform_1(%arg0: i32, %arg1: i32) -> (i32, i32) {
    %c0_i32 = arith.constant 0 : i32
    %c0_i32_0 = arith.constant 0 : i32
    return %arg0, %c0_i32 : i32, i32
  }
  func.func @transform_2(%arg0: i32, %arg1: i32) -> (i32, i32) {
    %c0_i32 = arith.constant 0 : i32
    %c0_i32_0 = arith.constant 0 : i32
    return %c0_i32, %arg0 : i32, i32
  }
}

</mosaic_0001>

<llo_original>
// kernel: tpu_custom_call.1
$region0: #{tpu_custom_call.1}
  #allocation0 [shape = 'u32[]', space=smem, size = 0x4, offset = 0x4, fixed_abs, tag = 'smem constant byte address 0x4 - core index']
  #allocation1 [shape = 'u32[72,128]{1,0:T(1,128)}', space=vmem, size = 0x9000, scoped, tag = 'internal scratch']
  #allocation2 [shape = 'f32[1,128]{1,0:T(1,128)}', space=vmem, size = 0x200, scoped, tag = 'scratch operand']
  #allocation3 [shape = 'f32[1,128]{1,0:T(1,128)}', space=vmem, size = 0x200, scoped, tag = 'scratch operand']
  #allocation4 [shape = 'f32[128,32]{1,0:T(8,128)}', space=vmem, size = 0x10000, scoped, tag = 'scratch operand']
  %s0 = inlined_call_operand.vmem [shape: f32[128,32], index: 0, kind: input, shape index: {}]
  %s1 = inlined_call_operand.vmem [shape: f32[128,32], index: 1, kind: input, shape index: {}]
  %s2 = inlined_call_operand.hbm [shape: f32[1,128], index: 2, kind: output, shape index: {}]
  %s3 = sld [smem:[#allocation0]]
  $region30: #{tpu_custom_call.1} parent=0
    _
  %s5 = ssub.s32 1, %s3
  %s6 = scalar_select 0, %s5, %s3
  $region1: #{tpu_custom_call.1} parent=0
    #allocation5 [shape = 'u8[512]{0}', space=vmem, size = 0x400, scoped, tag = 'output window, operand 0, single buffered']
    #allocation6 [shape = 's32[1]{0}', space=sflag, size = 0x4, scoped, tag = 'scoped memory for tpu_custom_call.1']
    %7 = vsyncpa [#allocation6], 0
    // Predicated region
    $region2: #{tpu_custom_call.1} parent=1 // pred_check
      _
    $region3: #{tpu_custom_call.1} parent=1 // pred_check_branch
      %9 = sbr.rel (0) target = $region5
    $region4: #{tpu_custom_call.1} parent=1 // pred_region
      _
    $region5: #{tpu_custom_call.1} parent=1 // pred_fallthru
      _
    // Predicated region
    $region6: #{tpu_custom_call.1} parent=1 // pred_check
      _
    $region7: #{tpu_custom_call.1} parent=1 // pred_check_branch
      %11 = sbr.rel (0) target = $region9
    $region8: #{tpu_custom_call.1} parent=1 // pred_region
      _
    $region9: #{tpu_custom_call.1} parent=1 // pred_fallthru
      _
    %p12 = scmp.eq.s32.totalorder 0, 0
    // Predicated region
    $region10: #{tpu_custom_call.1} parent=1 // pred_check
      %p13 = pneg %p12
    $region11: #{tpu_custom_call.1} parent=1 // pred_check_branch
      %15 = sbr.rel (%p13) target = $region13
    $region12: #{tpu_custom_call.1} parent=1 // pred_region
      %16 = vst [vmem:[#allocation2] sm:$0x1] 0.0
      %17 = vst [vmem:[#allocation3] sm:$0x1] 0.0
      %v18 = vld [vmem:[%s1] sm:$0xff]
      %v19 = vld [vmem:[%s1 + $0x8] sm:$0xff]
      %v20 = vld [vmem:[%s1 + $0x10] sm:$0xff]
      %v21 = vld [vmem:[%s1 + $0x18] sm:$0xff]
      %v22 = vld [vmem:[%s1 + $0x20] sm:$0xff]
      %v23 = vld [vmem:[%s1 + $0x28] sm:$0xff]
      %v24 = vld [vmem:[%s1 + $0x30] sm:$0xff]
      %v25 = vld [vmem:[%s1 + $0x38] sm:$0xff]
      %v26 = vld [vmem:[%s1 + $0x40] sm:$0xff]
      %v27 = vld [vmem:[%s1 + $0x48] sm:$0xff]
      %v28 = vld [vmem:[%s1 + $0x50] sm:$0xff]
      %v29 = vld [vmem:[%s1 + $0x58] sm:$0xff]
      %v30 = vld [vmem:[%s1 + $0x60] sm:$0xff]
      %v31 = vld [vmem:[%s1 + $0x68] sm:$0xff]
      %v32 = vld [vmem:[%s1 + $0x70] sm:$0xff]
      %v33 = vld [vmem:[%s1 + $0x78] sm:$0xff]
      %v34 = vmul.f32 %v18, %v18
      %v35 = vmul.f32 %v19, %v19
      %v36 = vmul.f32 %v20, %v20
      %v37 = vmul.f32 %v21, %v21
      %v38 = vmul.f32 %v22, %v22
      %v39 = vmul.f32 %v23, %v23
      %v40 = vmul.f32 %v24, %v24
      %v41 = vmul.f32 %v25, %v25
      %v42 = vmul.f32 %v26, %v26
      %v43 = vmul.f32 %v27, %v27
      %v44 = vmul.f32 %v28, %v28
      %v45 = vmul.f32 %v29, %v29
      %v46 = vmul.f32 %v30, %v30
      %v47 = vmul.f32 %v31, %v31
      %v48 = vmul.f32 %v32, %v32
      %v49 = vmul.f32 %v33, %v33
      %vm50 = vcmask 261120
      %v51 = vsel %vm50, %v34, 0.0
      %52 = vadd.xlane.f32.xlu0 %v51
      %v53 = vpop.xlane.xlu0 %52
      %v54 = vsel %vm50, %v35, 0.0
      %55 = vadd.xlane.f32.xlu0 %v54
      %v56 = vpop.xlane.xlu0 %55
      %v57 = vsel %vm50, %v36, 0.0
      %58 = vadd.xlane.f32.xlu0 %v57
      %v59 = vpop.xlane.xlu0 %58
      %v60 = vsel %vm50, %v37, 0.0
      %61 = vadd.xlane.f32.xlu0 %v60
      %v62 = vpop.xlane.xlu0 %61
      %v63 = vsel %vm50, %v38, 0.0
      %64 = vadd.xlane.f32.xlu0 %v63
      %v65 = vpop.xlane.xlu0 %64
      %v66 = vsel %vm50, %v39, 0.0
      %67 = vadd.xlane.f32.xlu0 %v66
      %v68 = vpop.xlane.xlu0 %67
      %v69 = vsel %vm50, %v40, 0.0
      %70 = vadd.xlane.f32.xlu0 %v69
      %v71 = vpop.xlane.xlu0 %70
      %v72 = vsel %vm50, %v41, 0.0
      %73 = vadd.xlane.f32.xlu0 %v72
      %v74 = vpop.xlane.xlu0 %73
      %v75 = vsel %vm50, %v42, 0.0
      %76 = vadd.xlane.f32.xlu0 %v75
      %v77 = vpop.xlane.xlu0 %76
      %v78 = vsel %vm50, %v43, 0.0
      %79 = vadd.xlane.f32.xlu0 %v78
      %v80 = vpop.xlane.xlu0 %79
      %v81 = vsel %vm50, %v44, 0.0
      %82 = vadd.xlane.f32.xlu0 %v81
      %v83 = vpop.xlane.xlu0 %82
      %v84 = vsel %vm50, %v45, 0.0
      %85 = vadd.xlane.f32.xlu0 %v84
      %v86 = vpop.xlane.xlu0 %85
      %v87 = vsel %vm50, %v46, 0.0
      %88 = vadd.xlane.f32.xlu0 %v87
      %v89 = vpop.xlane.xlu0 %88
      %v90 = vsel %vm50, %v47, 0.0
      %91 = vadd.xlane.f32.xlu0 %v90
      %v92 = vpop.xlane.xlu0 %91
      %v93 = vsel %vm50, %v48, 0.0
      %94 = vadd.xlane.f32.xlu0 %v93
      %v95 = vpop.xlane.xlu0 %94
      %v96 = vsel %vm50, %v49, 0.0
      %97 = vadd.xlane.f32.xlu0 %v96
      %v98 = vpop.xlane.xlu0 %97
      %v99 = vrsqrt.pop %v53
      %v100 = vmul.f32 %v99, %v53
      %v101 = vmul.f32 %v100, %v99
      %v102 = vmul.f32 0.5, %v101
      %v103 = vsub.f32 1.5, %v102
      %v104 = vmul.f32 %v99, %v103
      %vm105 = vweird.f32 %v53
      %vm106 = vweird.f32 %v99
      %vm107 = vmor %vm105, %vm106
      %v108 = vsel %vm107, %v99, %v104
      %v109 = vrsqrt.pop %v56
      %v110 = vmul.f32 %v109, %v56
      %v111 = vmul.f32 %v110, %v109
      %v112 = vmul.f32 0.5, %v111
      %v113 = vsub.f32 1.5, %v112
      %v114 = vmul.f32 %v109, %v113
      %vm115 = vweird.f32 %v56
      %vm116 = vweird.f32 %v109
      %vm117 = vmor %vm115, %vm116
      %v118 = vsel %vm117, %v109, %v114
      %v119 = vrsqrt.pop %v59
      %v120 = vmul.f32 %v119, %v59
      %v121 = vmul.f32 %v120, %v119
      %v122 = vmul.f32 0.5, %v121
      %v123 = vsub.f32 1.5, %v122
      %v124 = vmul.f32 %v119, %v123
      %vm125 = vweird.f32 %v59
      %vm126 = vweird.f32 %v119
      %vm127 = vmor %vm125, %vm126
      %v128 = vsel %vm127, %v119, %v124
      %v129 = vrsqrt.pop %v62
      %v130 = vmul.f32 %v129, %v62
      %v131 = vmul.f32 %v130, %v129
      %v132 = vmul.f32 0.5, %v131
      %v133 = vsub.f32 1.5, %v132
      %v134 = vmul.f32 %v129, %v133
      %vm135 = vweird.f32 %v62
      %vm136 = vweird.f32 %v129
      %vm137 = vmor %vm135, %vm136
      %v138 = vsel %vm137, %v129, %v134
      %v139 = vrsqrt.pop %v65
      %v140 = vmul.f32 %v139, %v65
      %v141 = vmul.f32 %v140, %v139
      %v142 = vmul.f32 0.5, %v141
      %v143 = vsub.f32 1.5, %v142
      %v144 = vmul.f32 %v139, %v143
      %vm145 = vweird.f32 %v65
      %vm146 = vweird.f32 %v139
      %vm147 = vmor %vm145, %vm146
      %v148 = vsel %vm147, %v139, %v144
      %v149 = vrsqrt.pop %v68
      %v150 = vmul.f32 %v149, %v68
      %v151 = vmul.f32 %v150, %v149
      %v152 = vmul.f32 0.5, %v151
      %v153 = vsub.f32 1.5, %v152
      %v154 = vmul.f32 %v149, %v153
      %vm155 = vweird.f32 %v68
      %vm156 = vweird.f32 %v149
      %vm157 = vmor %vm155, %vm156
      %v158 = vsel %vm157, %v149, %v154
      %v159 = vrsqrt.pop %v71
      %v160 = vmul.f32 %v159, %v71
      %v161 = vmul.f32 %v160, %v159
      %v162 = vmul.f32 0.5, %v161
      %v163 = vsub.f32 1.5, %v162
      %v164 = vmul.f32 %v159, %v163
      %vm165 = vweird.f32 %v71
      %vm166 = vweird.f32 %v159
      %vm167 = vmor %vm165, %vm166
      %v168 = vsel %vm167, %v159, %v164
      %v169 = vrsqrt.pop %v74
      %v170 = vmul.f32 %v169, %v74
      %v171 = vmul.f32 %v170, %v169
      %v172 = vmul.f32 0.5, %v171
      %v173 = vsub.f32 1.5, %v172
      %v174 = vmul.f32 %v169, %v173
      %vm175 = vweird.f32 %v74
      %vm176 = vweird.f32 %v169
      %vm177 = vmor %vm175, %vm176
      %v178 = vsel %vm177, %v169, %v174
      %v179 = vrsqrt.pop %v77
      %v180 = vmul.f32 %v179, %v77
      %v181 = vmul.f32 %v180, %v179
      %v182 = vmul.f32 0.5, %v181
      %v183 = vsub.f32 1.5, %v182
      %v184 = vmul.f32 %v179, %v183
      %vm185 = vweird.f32 %v77
      %vm186 = vweird.f32 %v179
      %vm187 = vmor %vm185, %vm186
      %v188 = vsel %vm187, %v179, %v184
      %v189 = vrsqrt.pop %v80
      %v190 = vmul.f32 %v189, %v80
      %v191 = vmul.f32 %v190, %v189
      %v192 = vmul.f32 0.5, %v191
      %v193 = vsub.f32 1.5, %v192
      %v194 = vmul.f32 %v189, %v193
      %vm195 = vweird.f32 %v80
      %vm196 = vweird.f32 %v189
      %vm197 = vmor %vm195, %vm196
      %v198 = vsel %vm197, %v189, %v194
      %v199 = vrsqrt.pop %v83
      %v200 = vmul.f32 %v199, %v83
      %v201 = vmul.f32 %v200, %v199
      %v202 = vmul.f32 0.5, %v201
      %v203 = vsub.f32 1.5, %v202
      %v204 = vmul.f32 %v199, %v203
      %vm205 = vweird.f32 %v83
      %vm206 = vweird.f32 %v199
      %vm207 = vmor %vm205, %vm206
      %v208 = vsel %vm207, %v199, %v204
      %v209 = vrsqrt.pop %v86
      %v210 = vmul.f32 %v209, %v86
      %v211 = vmul.f32 %v210, %v209
      %v212 = vmul.f32 0.5, %v211
      %v213 = vsub.f32 1.5, %v212
      %v214 = vmul.f32 %v209, %v213
      %vm215 = vweird.f32 %v86
      %vm216 = vweird.f32 %v209
      %vm217 = vmor %vm215, %vm216
      %v218 = vsel %vm217, %v209, %v214
      %v219 = vrsqrt.pop %v89
      %v220 = vmul.f32 %v219, %v89
      %v221 = vmul.f32 %v220, %v219
      %v222 = vmul.f32 0.5, %v221
      %v223 = vsub.f32 1.5, %v222
      %v224 = vmul.f32 %v219, %v223
      %vm225 = vweird.f32 %v89
      %vm226 = vweird.f32 %v219
      %vm227 = vmor %vm225, %vm226
      %v228 = vsel %vm227, %v219, %v224
      %v229 = vrsqrt.pop %v92
      %v230 = vmul.f32 %v229, %v92
      %v231 = vmul.f32 %v230, %v229
      %v232 = vmul.f32 0.5, %v231
      %v233 = vsub.f32 1.5, %v232
      %v234 = vmul.f32 %v229, %v233
      %vm235 = vweird.f32 %v92
      %vm236 = vweird.f32 %v229
      %vm237 = vmor %vm235, %vm236
      %v238 = vsel %vm237, %v229, %v234
      %v239 = vrsqrt.pop %v95
      %v240 = vmul.f32 %v239, %v95
      %v241 = vmul.f32 %v240, %v239
      %v242 = vmul.f32 0.5, %v241
      %v243 = vsub.f32 1.5, %v242
      %v244 = vmul.f32 %v239, %v243
      %vm245 = vweird.f32 %v95
      %vm246 = vweird.f32 %v239
      %vm247 = vmor %vm245, %vm246
      %v248 = vsel %vm247, %v239, %v244
      %v249 = vrsqrt.pop %v98
      %v250 = vmul.f32 %v249, %v98
      %v251 = vmul.f32 %v250, %v249
      %v252 = vmul.f32 0.5, %v251
      %v253 = vsub.f32 1.5, %v252
      %v254 = vmul.f32 %v249, %v253
      %vm255 = vweird.f32 %v98
      %vm256 = vweird.f32 %v249
      %vm257 = vmor %vm255, %vm256
      %v258 = vsel %vm257, %v249, %v254
      %v259 = vmul.f32 %v18, %v108
      %v260 = vmul.f32 %v19, %v118
      %v261 = vmul.f32 %v20, %v128
      %v262 = vmul.f32 %v21, %v138
      %v263 = vmul.f32 %v22, %v148
      %v264 = vmul.f32 %v23, %v158
      %v265 = vmul.f32 %v24, %v168
      %v266 = vmul.f32 %v25, %v178
      %v267 = vmul.f32 %v26, %v188
      %v268 = vmul.f32 %v27, %v198
      %v269 = vmul.f32 %v28, %v208
      %v270 = vmul.f32 %v29, %v218
      %v271 = vmul.f32 %v30, %v228
      %v272 = vmul.f32 %v31, %v238
      %v273 = vmul.f32 %v32, %v248
      %v274 = vmul.f32 %v33, %v258
      %275 = vst.msk [vmem:[#allocation4] sm:$0xff] %vm50, %v259
      %276 = vst.msk [vmem:[#allocation4 + $0x8] sm:$0xff] %vm50, %v260
      %277 = vst.msk [vmem:[#allocation4 + $0x10] sm:$0xff] %vm50, %v261
      %278 = vst.msk [vmem:[#allocation4 + $0x18] sm:$0xff] %vm50, %v262
      %279 = vst.msk [vmem:[#allocation4 + $0x20] sm:$0xff] %vm50, %v263
      %280 = vst.msk [vmem:[#allocation4 + $0x28] sm:$0xff] %vm50, %v264
      %281 = vst.msk [vmem:[#allocation4 + $0x30] sm:$0xff] %vm50, %v265
      %282 = vst.msk [vmem:[#allocation4 + $0x38] sm:$0xff] %vm50, %v266
      %283 = vst.msk [vmem:[#allocation4 + $0x40] sm:$0xff] %vm50, %v267
      %284 = vst.msk [vmem:[#allocation4 + $0x48] sm:$0xff] %vm50, %v268
      %285 = vst.msk [vmem:[#allocation4 + $0x50] sm:$0xff] %vm50, %v269
      %286 = vst.msk [vmem:[#allocation4 + $0x58] sm:$0xff] %vm50, %v270
      %287 = vst.msk [vmem:[#allocation4 + $0x60] sm:$0xff] %vm50, %v271
      %288 = vst.msk [vmem:[#allocation4 + $0x68] sm:$0xff] %vm50, %v272
      %289 = vst.msk [vmem:[#allocation4 + $0x70] sm:$0xff] %vm50, %v273
      %290 = vst.msk [vmem:[#allocation4 + $0x78] sm:$0xff] %vm50, %v274
    $region13: #{tpu_custom_call.1} parent=1 // pred_fallthru
      _
    %v291 = vld [vmem:[%s0] sm:$0xff]
    %v292 = vld [vmem:[%s0 + $0x8] sm:$0xff]
    %v293 = vld [vmem:[%s0 + $0x10] sm:$0xff]
    %v294 = vld [vmem:[%s0 + $0x18] sm:$0xff]
    %v295 = vld [vmem:[%s0 + $0x20] sm:$0xff]
    %v296 = vld [vmem:[%s0 + $0x28] sm:$0xff]
    %v297 = vld [vmem:[%s0 + $0x30] sm:$0xff]
    %v298 = vld [vmem:[%s0 + $0x38] sm:$0xff]
    %v299 = vld [vmem:[%s0 + $0x40] sm:$0xff]
    %v300 = vld [vmem:[%s0 + $0x48] sm:$0xff]
    %v301 = vld [vmem:[%s0 + $0x50] sm:$0xff]
    %v302 = vld [vmem:[%s0 + $0x58] sm:$0xff]
    %v303 = vld [vmem:[%s0 + $0x60] sm:$0xff]
    %v304 = vld [vmem:[%s0 + $0x68] sm:$0xff]
    %v305 = vld [vmem:[%s0 + $0x70] sm:$0xff]
    %v306 = vld [vmem:[%s0 + $0x78] sm:$0xff]
    %v307 = vmul.f32 %v291, %v291
    %v308 = vmul.f32 %v292, %v292
    %v309 = vmul.f32 %v293, %v293
    %v310 = vmul.f32 %v294, %v294
    %v311 = vmul.f32 %v295, %v295
    %v312 = vmul.f32 %v296, %v296
    %v313 = vmul.f32 %v297, %v297
    %v314 = vmul.f32 %v298, %v298
    %v315 = vmul.f32 %v299, %v299
    %v316 = vmul.f32 %v300, %v300
    %v317 = vmul.f32 %v301, %v301
    %v318 = vmul.f32 %v302, %v302
    %v319 = vmul.f32 %v303, %v303
    %v320 = vmul.f32 %v304, %v304
    %v321 = vmul.f32 %v305, %v305
    %v322 = vmul.f32 %v306, %v306
    %vm323 = vcmask 261120
    %v324 = vsel %vm323, %v307, 0.0
    %325 = vadd.xlane.f32.xlu0 %v324
    %v326 = vpop.xlane.xlu0 %325
    %v327 = vsel %vm323, %v308, 0.0
    %328 = vadd.xlane.f32.xlu0 %v327
    %v329 = vpop.xlane.xlu0 %328
    %v330 = vsel %vm323, %v309, 0.0
    %331 = vadd.xlane.f32.xlu0 %v330
    %v332 = vpop.xlane.xlu0 %331
    %v333 = vsel %vm323, %v310, 0.0
    %334 = vadd.xlane.f32.xlu0 %v333
    %v335 = vpop.xlane.xlu0 %334
    %v336 = vsel %vm323, %v311, 0.0
    %337 = vadd.xlane.f32.xlu0 %v336
    %v338 = vpop.xlane.xlu0 %337
    %v339 = vsel %vm323, %v312, 0.0
    %340 = vadd.xlane.f32.xlu0 %v339
    %v341 = vpop.xlane.xlu0 %340
    %v342 = vsel %vm323, %v313, 0.0
    %343 = vadd.xlane.f32.xlu0 %v342
    %v344 = vpop.xlane.xlu0 %343
    %v345 = vsel %vm323, %v314, 0.0
    %346 = vadd.xlane.f32.xlu0 %v345
    %v347 = vpop.xlane.xlu0 %346
    %v348 = vsel %vm323, %v315, 0.0
    %349 = vadd.xlane.f32.xlu0 %v348
    %v350 = vpop.xlane.xlu0 %349
    %v351 = vsel %vm323, %v316, 0.0
    %352 = vadd.xlane.f32.xlu0 %v351
    %v353 = vpop.xlane.xlu0 %352
    %v354 = vsel %vm323, %v317, 0.0
    %355 = vadd.xlane.f32.xlu0 %v354
    %v356 = vpop.xlane.xlu0 %355
    %v357 = vsel %vm323, %v318, 0.0
    %358 = vadd.xlane.f32.xlu0 %v357
    %v359 = vpop.xlane.xlu0 %358
    %v360 = vsel %vm323, %v319, 0.0
    %361 = vadd.xlane.f32.xlu0 %v360
    %v362 = vpop.xlane.xlu0 %361
    %v363 = vsel %vm323, %v320, 0.0
    %364 = vadd.xlane.f32.xlu0 %v363
    %v365 = vpop.xlane.xlu0 %364
    %v366 = vsel %vm323, %v321, 0.0
    %367 = vadd.xlane.f32.xlu0 %v366
    %v368 = vpop.xlane.xlu0 %367
    %v369 = vsel %vm323, %v322, 0.0
    %370 = vadd.xlane.f32.xlu0 %v369
    %v371 = vpop.xlane.xlu0 %370
    %v372 = vrsqrt.pop %v326
    %v373 = vmul.f32 %v372, %v326
    %v374 = vmul.f32 %v373, %v372
    %v375 = vmul.f32 0.5, %v374
    %v376 = vsub.f32 1.5, %v375
    %v377 = vmul.f32 %v372, %v376
    %vm378 = vweird.f32 %v326
    %vm379 = vweird.f32 %v372
    %vm380 = vmor %vm378, %vm379
    %v381 = vsel %vm380, %v372, %v377
    %v382 = vrsqrt.pop %v329
    %v383 = vmul.f32 %v382, %v329
    %v384 = vmul.f32 %v383, %v382
    %v385 = vmul.f32 0.5, %v384
    %v386 = vsub.f32 1.5, %v385
    %v387 = vmul.f32 %v382, %v386
    %vm388 = vweird.f32 %v329
    %vm389 = vweird.f32 %v382
    %vm390 = vmor %vm388, %vm389
    %v391 = vsel %vm390, %v382, %v387
    %v392 = vrsqrt.pop %v332
    %v393 = vmul.f32 %v392, %v332
    %v394 = vmul.f32 %v393, %v392
    %v395 = vmul.f32 0.5, %v394
    %v396 = vsub.f32 1.5, %v395
    %v397 = vmul.f32 %v392, %v396
    %vm398 = vweird.f32 %v332
    %vm399 = vweird.f32 %v392
    %vm400 = vmor %vm398, %vm399
    %v401 = vsel %vm400, %v392, %v397
    %v402 = vrsqrt.pop %v335
    %v403 = vmul.f32 %v402, %v335
    %v404 = vmul.f32 %v403, %v402
    %v405 = vmul.f32 0.5, %v404
    %v406 = vsub.f32 1.5, %v405
    %v407 = vmul.f32 %v402, %v406
    %vm408 = vweird.f32 %v335
    %vm409 = vweird.f32 %v402
    %vm410 = vmor %vm408, %vm409
    %v411 = vsel %vm410, %v402, %v407
    %v412 = vrsqrt.pop %v338
    %v413 = vmul.f32 %v412, %v338
    %v414 = vmul.f32 %v413, %v412
    %v415 = vmul.f32 0.5, %v414
    %v416 = vsub.f32 1.5, %v415
    %v417 = vmul.f32 %v412, %v416
    %vm418 = vweird.f32 %v338
    %vm419 = vweird.f32 %v412
    %vm420 = vmor %vm418, %vm419
    %v421 = vsel %vm420, %v412, %v417
    %v422 = vrsqrt.pop %v341
    %v423 = vmul.f32 %v422, %v341
    %v424 = vmul.f32 %v423, %v422
    %v425 = vmul.f32 0.5, %v424
    %v426 = vsub.f32 1.5, %v425
    %v427 = vmul.f32 %v422, %v426
    %vm428 = vweird.f32 %v341
    %vm429 = vweird.f32 %v422
    %vm430 = vmor %vm428, %vm429
    %v431 = vsel %vm430, %v422, %v427
    %v432 = vrsqrt.pop %v344
    %v433 = vmul.f32 %v432, %v344
    %v434 = vmul.f32 %v433, %v432
    %v435 = vmul.f32 0.5, %v434
    %v436 = vsub.f32 1.5, %v435
    %v437 = vmul.f32 %v432, %v436
    %vm438 = vweird.f32 %v344
    %vm439 = vweird.f32 %v432
    %vm440 = vmor %vm438, %vm439
    %v441 = vsel %vm440, %v432, %v437
    %v442 = vrsqrt.pop %v347
    %v443 = vmul.f32 %v442, %v347
    %v444 = vmul.f32 %v443, %v442
    %v445 = vmul.f32 0.5, %v444
    %v446 = vsub.f32 1.5, %v445
    %v447 = vmul.f32 %v442, %v446
    %vm448 = vweird.f32 %v347
    %vm449 = vweird.f32 %v442
    %vm450 = vmor %vm448, %vm449
    %v451 = vsel %vm450, %v442, %v447
    %v452 = vrsqrt.pop %v350
    %v453 = vmul.f32 %v452, %v350
    %v454 = vmul.f32 %v453, %v452
    %v455 = vmul.f32 0.5, %v454
    %v456 = vsub.f32 1.5, %v455
    %v457 = vmul.f32 %v452, %v456
    %vm458 = vweird.f32 %v350
    %vm459 = vweird.f32 %v452
    %vm460 = vmor %vm458, %vm459
    %v461 = vsel %vm460, %v452, %v457
    %v462 = vrsqrt.pop %v353
    %v463 = vmul.f32 %v462, %v353
    %v464 = vmul.f32 %v463, %v462
    %v465 = vmul.f32 0.5, %v464
    %v466 = vsub.f32 1.5, %v465
    %v467 = vmul.f32 %v462, %v466
    %vm468 = vweird.f32 %v353
    %vm469 = vweird.f32 %v462
    %vm470 = vmor %vm468, %vm469
    %v471 = vsel %vm470, %v462, %v467
    %v472 = vrsqrt.pop %v356
    %v473 = vmul.f32 %v472, %v356
    %v474 = vmul.f32 %v473, %v472
    %v475 = vmul.f32 0.5, %v474
    %v476 = vsub.f32 1.5, %v475
    %v477 = vmul.f32 %v472, %v476
    %vm478 = vweird.f32 %v356
    %vm479 = vweird.f32 %v472
    %vm480 = vmor %vm478, %vm479
    %v481 = vsel %vm480, %v472, %v477
    %v482 = vrsqrt.pop %v359
    %v483 = vmul.f32 %v482, %v359
    %v484 = vmul.f32 %v483, %v482
    %v485 = vmul.f32 0.5, %v484
    %v486 = vsub.f32 1.5, %v485
    %v487 = vmul.f32 %v482, %v486
    %vm488 = vweird.f32 %v359
    %vm489 = vweird.f32 %v482
    %vm490 = vmor %vm488, %vm489
    %v491 = vsel %vm490, %v482, %v487
    %v492 = vrsqrt.pop %v362
    %v493 = vmul.f32 %v492, %v362
    %v494 = vmul.f32 %v493, %v492
    %v495 = vmul.f32 0.5, %v494
    %v496 = vsub.f32 1.5, %v495
    %v497 = vmul.f32 %v492, %v496
    %vm498 = vweird.f32 %v362
    %vm499 = vweird.f32 %v492
    %vm500 = vmor %vm498, %vm499
    %v501 = vsel %vm500, %v492, %v497
    %v502 = vrsqrt.pop %v365
    %v503 = vmul.f32 %v502, %v365
    %v504 = vmul.f32 %v503, %v502
    %v505 = vmul.f32 0.5, %v504
    %v506 = vsub.f32 1.5, %v505
    %v507 = vmul.f32 %v502, %v506
    %vm508 = vweird.f32 %v365
    %vm509 = vweird.f32 %v502
    %vm510 = vmor %vm508, %vm509
    %v511 = vsel %vm510, %v502, %v507
    %v512 = vrsqrt.pop %v368
    %v513 = vmul.f32 %v512, %v368
    %v514 = vmul.f32 %v513, %v512
    %v515 = vmul.f32 0.5, %v514
    %v516 = vsub.f32 1.5, %v515
    %v517 = vmul.f32 %v512, %v516
    %vm518 = vweird.f32 %v368
    %vm519 = vweird.f32 %v512
    %vm520 = vmor %vm518, %vm519
    %v521 = vsel %vm520, %v512, %v517
    %v522 = vrsqrt.pop %v371
    %v523 = vmul.f32 %v522, %v371
    %v524 = vmul.f32 %v523, %v522
    %v525 = vmul.f32 0.5, %v524
    %v526 = vsub.f32 1.5, %v525
    %v527 = vmul.f32 %v522, %v526
    %vm528 = vweird.f32 %v371
    %vm529 = vweird.f32 %v522
    %vm530 = vmor %vm528, %vm529
    %v531 = vsel %vm530, %v522, %v527
    %v532 = vmul.f32 %v381, 14.285714
    %v533 = vmul.f32 %v391, 14.285714
    %v534 = vmul.f32 %v401, 14.285714
    %v535 = vmul.f32 %v411, 14.285714
    %v536 = vmul.f32 %v421, 14.285714
    %v537 = vmul.f32 %v431, 14.285714
    %v538 = vmul.f32 %v441, 14.285714
    %v539 = vmul.f32 %v451, 14.285714
    %v540 = vmul.f32 %v461, 14.285714
    %v541 = vmul.f32 %v471, 14.285714
    %v542 = vmul.f32 %v481, 14.285714
    %v543 = vmul.f32 %v491, 14.285714
    %v544 = vmul.f32 %v501, 14.285714
    %v545 = vmul.f32 %v511, 14.285714
    %v546 = vmul.f32 %v521, 14.285714
    %v547 = vmul.f32 %v531, 14.285714
    %v548 = vmul.f32 %v291, %v532
    %v549 = vmul.f32 %v292, %v533
    %v550 = vmul.f32 %v293, %v534
    %v551 = vmul.f32 %v294, %v535
    %v552 = vmul.f32 %v295, %v536
    %v553 = vmul.f32 %v296, %v537
    %v554 = vmul.f32 %v297, %v538
    %v555 = vmul.f32 %v298, %v539
    %v556 = vmul.f32 %v299, %v540
    %v557 = vmul.f32 %v300, %v541
    %v558 = vmul.f32 %v301, %v542
    %v559 = vmul.f32 %v302, %v543
    %v560 = vmul.f32 %v303, %v544
    %v561 = vmul.f32 %v304, %v545
    %v562 = vmul.f32 %v305, %v546
    %v563 = vmul.f32 %v306, %v547
    %v564 = vld [vmem:[#allocation4] sm:$0xff]
    %v565 = vld [vmem:[#allocation4 + $0x8] sm:$0xff]
    %v566 = vld [vmem:[#allocation4 + $0x10] sm:$0xff]
    %v567 = vld [vmem:[#allocation4 + $0x18] sm:$0xff]
    %v568 = vld [vmem:[#allocation4 + $0x20] sm:$0xff]
    %v569 = vld [vmem:[#allocation4 + $0x28] sm:$0xff]
    %v570 = vld [vmem:[#allocation4 + $0x30] sm:$0xff]
    %v571 = vld [vmem:[#allocation4 + $0x38] sm:$0xff]
    %v572 = vld [vmem:[#allocation4 + $0x40] sm:$0xff]
    %v573 = vld [vmem:[#allocation4 + $0x48] sm:$0xff]
    %v574 = vld [vmem:[#allocation4 + $0x50] sm:$0xff]
    %v575 = vld [vmem:[#allocation4 + $0x58] sm:$0xff]
    %v576 = vld [vmem:[#allocation4 + $0x60] sm:$0xff]
    %v577 = vld [vmem:[#allocation4 + $0x68] sm:$0xff]
    %v578 = vld [vmem:[#allocation4 + $0x70] sm:$0xff]
    %v579 = vld [vmem:[#allocation4 + $0x78] sm:$0xff]
    %v581 = vsel %vm323, %v548, 0
    %v584 = vsel %vm323, %v549, 0
    %v587 = vsel %vm323, %v550, 0
    %v590 = vsel %vm323, %v551, 0
    %v593 = vsel %vm323, %v552, 0
    %v596 = vsel %vm323, %v553, 0
    %v599 = vsel %vm323, %v554, 0
    %v602 = vsel %vm323, %v555, 0
    %v605 = vsel %vm323, %v556, 0
    %v608 = vsel %vm323, %v557, 0
    %v611 = vsel %vm323, %v558, 0
    %v614 = vsel %vm323, %v559, 0
    %v617 = vsel %vm323, %v560, 0
    %v620 = vsel %vm323, %v561, 0
    %v623 = vsel %vm323, %v562, 0
    %v626 = vsel %vm323, %v563, 0
    %v629 = vsel %vm323, %v564, 0
    %v632 = vsel %vm323, %v565, 0
    %v635 = vsel %vm323, %v566, 0
    %v638 = vsel %vm323, %v567, 0
    %v641 = vsel %vm323, %v568, 0
    %v644 = vsel %vm323, %v569, 0
    %v647 = vsel %vm323, %v570, 0
    %v650 = vsel %vm323, %v571, 0
    %v653 = vsel %vm323, %v572, 0
    %v656 = vsel %vm323, %v573, 0
    %v659 = vsel %vm323, %v574, 0
    %v662 = vsel %vm323, %v575, 0
    %v665 = vsel %vm323, %v576, 0
    %v668 = vsel %vm323, %v577, 0
    %v671 = vsel %vm323, %v578, 0
    %v674 = vsel %vm323, %v579, 0
    %676 = vmatpush.xpose.msra.mxu0 %v674
    %677 = vmatpush.xpose.msra.mxu0 %v671
    %678 = vmatpush.xpose.msra.mxu0 %v668
    %679 = vmatpush.xpose.msra.mxu0 %v665
    %680 = vmatpush.xpose.msra.mxu0 %v662
    %681 = vmatpush.xpose.msra.mxu0 %v659
    %682 = vmatpush.xpose.msra.mxu0 %v656
    %683 = vmatpush.xpose.msra.mxu0 %v653
    %684 = vmatpush.xpose.msra.mxu0 %v650
    %685 = vmatpush.xpose.msra.mxu0 %v647
    %686 = vmatpush.xpose.msra.mxu0 %v644
    %687 = vmatpush.xpose.msra.mxu0 %v641
    %688 = vmatpush.xpose.msra.mxu0 %v638
    %689 = vmatpush.xpose.msra.mxu0 %v635
    %690 = vmatpush.xpose.msra.mxu0 %v632
    %691 = vmatpush.xpose.msra.mxu0 %v629
    %692 = vmatmul.f32.gmra.mxu0 %v581
    %v693 = vpop.f32.mrf.mxu0
    %v694 = vadd.f32 0.0, %v693
    %695 = vmatmul.f32.gmra.mxu0 %v584
    %v696 = vpop.f32.mrf.mxu0
    %v697 = vadd.f32 0.0, %v696
    %698 = vmatmul.f32.gmra.mxu0 %v587
    %v699 = vpop.f32.mrf.mxu0
    %v700 = vadd.f32 0.0, %v699
    %701 = vmatmul.f32.gmra.mxu0 %v590
    %v702 = vpop.f32.mrf.mxu0
    %v703 = vadd.f32 0.0, %v702
    %704 = vmatmul.f32.gmra.mxu0 %v593
    %v705 = vpop.f32.mrf.mxu0
    %v706 = vadd.f32 0.0, %v705
    %707 = vmatmul.f32.gmra.mxu0 %v596
    %v708 = vpop.f32.mrf.mxu0
    %v709 = vadd.f32 0.0, %v708
    %710 = vmatmul.f32.gmra.mxu0 %v599
    %v711 = vpop.f32.mrf.mxu0
    %v712 = vadd.f32 0.0, %v711
    %713 = vmatmul.f32.gmra.mxu0 %v602
    %v714 = vpop.f32.mrf.mxu0
    %v715 = vadd.f32 0.0, %v714
    %716 = vmatmul.f32.gmra.mxu0 %v605
    %v717 = vpop.f32.mrf.mxu0
    %v718 = vadd.f32 0.0, %v717
    %719 = vmatmul.f32.gmra.mxu0 %v608
    %v720 = vpop.f32.mrf.mxu0
    %v721 = vadd.f32 0.0, %v720
    %722 = vmatmul.f32.gmra.mxu0 %v611
    %v723 = vpop.f32.mrf.mxu0
    %v724 = vadd.f32 0.0, %v723
    %725 = vmatmul.f32.gmra.mxu0 %v614
    %v726 = vpop.f32.mrf.mxu0
    %v727 = vadd.f32 0.0, %v726
    %728 = vmatmul.f32.gmra.mxu0 %v617
    %v729 = vpop.f32.mrf.mxu0
    %v730 = vadd.f32 0.0, %v729
    %731 = vmatmul.f32.gmra.mxu0 %v620
    %v732 = vpop.f32.mrf.mxu0
    %v733 = vadd.f32 0.0, %v732
    %734 = vmatmul.f32.gmra.mxu0 %v623
    %v735 = vpop.f32.mrf.mxu0
    %v736 = vadd.f32 0.0, %v735
    %737 = vmatmul.f32.gmra.mxu0 %v626
    %v738 = vpop.f32.mrf.mxu0
    %v739 = vadd.f32 0.0, %v738
    %740 = vdwg.mxu0
    %v741 = vsub.f32 %v694, 14.285714
    %v742 = vsub.f32 %v697, 14.285714
    %v743 = vsub.f32 %v700, 14.285714
    %v744 = vsub.f32 %v703, 14.285714
    %v745 = vsub.f32 %v706, 14.285714
    %v746 = vsub.f32 %v709, 14.285714
    %v747 = vsub.f32 %v712, 14.285714
    %v748 = vsub.f32 %v715, 14.285714
    %v749 = vsub.f32 %v718, 14.285714
    %v750 = vsub.f32 %v721, 14.285714
    %v751 = vsub.f32 %v724, 14.285714
    %v752 = vsub.f32 %v727, 14.285714
    %v753 = vsub.f32 %v730, 14.285714
    %v754 = vsub.f32 %v733, 14.285714
    %v755 = vsub.f32 %v736, 14.285714
    %v756 = vsub.f32 %v739, 14.285714
    %v757 = vmul.f32 %v741, 1.442695
    %v758 = vpow.pop %v757
    %v759 = vmul.f32 %v742, 1.442695
    %v760 = vpow.pop %v759
    %v761 = vmul.f32 %v743, 1.442695
    %v762 = vpow.pop %v761
    %v763 = vmul.f32 %v744, 1.442695
    %v764 = vpow.pop %v763
    %v765 = vmul.f32 %v745, 1.442695
    %v766 = vpow.pop %v765
    %v767 = vmul.f32 %v746, 1.442695
    %v768 = vpow.pop %v767
    %v769 = vmul.f32 %v747, 1.442695
    %v770 = vpow.pop %v769
    %v771 = vmul.f32 %v748, 1.442695
    %v772 = vpow.pop %v771
    %v773 = vmul.f32 %v749, 1.442695
    %v774 = vpow.pop %v773
    %v775 = vmul.f32 %v750, 1.442695
    %v776 = vpow.pop %v775
    %v777 = vmul.f32 %v751, 1.442695
    %v778 = vpow.pop %v777
    %v779 = vmul.f32 %v752, 1.442695
    %v780 = vpow.pop %v779
    %v781 = vmul.f32 %v753, 1.442695
    %v782 = vpow.pop %v781
    %v783 = vmul.f32 %v754, 1.442695
    %v784 = vpow.pop %v783
    %v785 = vmul.f32 %v755, 1.442695
    %v786 = vpow.pop %v785
    %v787 = vmul.f32 %v756, 1.442695
    %v788 = vpow.pop %v787
    %v789 = vlaneseq
    %v790 = vshrl.u32 %v789, 7
    %v791 = vadd.s32 %v790, 8
    %v792 = vadd.s32 %v790, 16
    %v793 = vadd.s32 %v790, 24
    %v794 = vadd.s32 %v790, 32
    %v795 = vadd.s32 %v790, 40
    %v796 = vadd.s32 %v790, 48
    %v797 = vadd.s32 %v790, 56
    %v798 = vadd.s32 %v790, 64
    %v799 = vadd.s32 %v790, 72
    %v800 = vadd.s32 %v790, 80
    %v801 = vadd.s32 %v790, 88
    %v802 = vadd.s32 %v790, 96
    %v803 = vadd.s32 %v790, 104
    %v804 = vadd.s32 %v790, 112
    %v805 = vadd.s32 %v790, 120
    %s806 = smul.u32 0, 128
    %v807 = vstv %s806
    %v808 = vadd.s32 %v790, %v807
    %v809 = vadd.s32 %v791, %v807
    %v810 = vadd.s32 %v792, %v807
    %v811 = vadd.s32 %v793, %v807
    %v812 = vadd.s32 %v794, %v807
    %v813 = vadd.s32 %v795, %v807
    %v814 = vadd.s32 %v796, %v807
    %v815 = vadd.s32 %v797, %v807
    %v816 = vadd.s32 %v798, %v807
    %v817 = vadd.s32 %v799, %v807
    %v818 = vadd.s32 %v800, %v807
    %v819 = vadd.s32 %v801, %v807
    %v820 = vadd.s32 %v802, %v807
    %v821 = vadd.s32 %v803, %v807
    %v822 = vadd.s32 %v804, %v807
    %v823 = vadd.s32 %v805, %v807
    %vm824 = vcmp.lt.s32.totalorder %v808, 8
    %vm825 = vcmp.lt.s32.totalorder %v809, 8
    %vm826 = vcmp.lt.s32.totalorder %v810, 8
    %vm827 = vcmp.lt.s32.totalorder %v811, 8
    %vm828 = vcmp.lt.s32.totalorder %v812, 8
    %vm829 = vcmp.lt.s32.totalorder %v813, 8
    %vm830 = vcmp.lt.s32.totalorder %v814, 8
    %vm831 = vcmp.lt.s32.totalorder %v815, 8
    %vm832 = vcmp.lt.s32.totalorder %v816, 8
    %vm833 = vcmp.lt.s32.totalorder %v817, 8
    %vm834 = vcmp.lt.s32.totalorder %v818, 8
    %vm835 = vcmp.lt.s32.totalorder %v819, 8
    %vm836 = vcmp.lt.s32.totalorder %v820, 8
    %vm837 = vcmp.lt.s32.totalorder %v821, 8
    %vm838 = vcmp.lt.s32.totalorder %v822, 8
    %vm839 = vcmp.lt.s32.totalorder %v823, 8
    %v840 = vsel %vm824, %v758, 0.0
    %v841 = vsel %vm825, %v760, 0.0
    %v842 = vsel %vm826, %v762, 0.0
    %v843 = vsel %vm827, %v764, 0.0
    %v844 = vsel %vm828, %v766, 0.0
    %v845 = vsel %vm829, %v768, 0.0
    %v846 = vsel %vm830, %v770, 0.0
    %v847 = vsel %vm831, %v772, 0.0
    %v848 = vsel %vm832, %v774, 0.0
    %v849 = vsel %vm833, %v776, 0.0
    %v850 = vsel %vm834, %v778, 0.0
    %v851 = vsel %vm835, %v780, 0.0
    %v852 = vsel %vm836, %v782, 0.0
    %v853 = vsel %vm837, %v784, 0.0
    %v854 = vsel %vm838, %v786, 0.0
    %v855 = vsel %vm839, %v788, 0.0
    %v856 = vld [vmem:[#allocation2] sm:$0x1]
    %v857 = vadd.f32 %v840, %v841
    %v858 = vadd.f32 %v857, %v842
    %v859 = vadd.f32 %v858, %v843
    %v860 = vadd.f32 %v859, %v844
    %v861 = vadd.f32 %v860, %v845
    %v862 = vadd.f32 %v861, %v846
    %v863 = vadd.f32 %v862, %v847
    %v864 = vadd.f32 %v863, %v848
    %v865 = vadd.f32 %v864, %v849
    %v866 = vadd.f32 %v865, %v850
    %v867 = vadd.f32 %v866, %v851
    %v868 = vadd.f32 %v867, %v852
    %v869 = vadd.f32 %v868, %v853
    %v870 = vadd.f32 %v869, %v854
    %v871 = vadd.f32 %v870, %v855
    %v872 = vrot.slane %v871, 4
    %v873 = vadd.f32 %v871, %v872
    %v874 = vrot.slane %v873, 2
    %v875 = vadd.f32 %v873, %v874
    %v876 = vrot.slane %v875, 1
    %v877 = vadd.f32 %v875, %v876
    %v878 = vadd.f32 %v856, %v877
    %879 = vst [vmem:[#allocation2] sm:$0x1] %v878
    %p880 = scmp.eq.s32.totalorder 0, 0
    // Predicated region
    $region14: #{tpu_custom_call.1} parent=1 // pred_check
      %p881 = pneg %p880
    $region15: #{tpu_custom_call.1} parent=1 // pred_check_branch
      %883 = sbr.rel (%p881) target = $region17
    $region16: #{tpu_custom_call.1} parent=1 // pred_region
      %v884 = vlaneseq
      %v885 = vand.u32 %v884, 127
      %vm886 = vcmp.eq.s32.totalorder %v790, %v885
      %vm887 = vcmp.eq.s32.totalorder %v791, %v885
      %vm888 = vcmp.eq.s32.totalorder %v792, %v885
      %vm889 = vcmp.eq.s32.totalorder %v793, %v885
      %vm890 = vcmp.eq.s32.totalorder %v794, %v885
      %vm891 = vcmp.eq.s32.totalorder %v795, %v885
      %vm892 = vcmp.eq.s32.totalorder %v796, %v885
      %vm893 = vcmp.eq.s32.totalorder %v797, %v885
      %vm894 = vcmp.eq.s32.totalorder %v798, %v885
      %vm895 = vcmp.eq.s32.totalorder %v799, %v885
      %vm896 = vcmp.eq.s32.totalorder %v800, %v885
      %vm897 = vcmp.eq.s32.totalorder %v801, %v885
      %vm898 = vcmp.eq.s32.totalorder %v802, %v885
      %vm899 = vcmp.eq.s32.totalorder %v803, %v885
      %vm900 = vcmp.eq.s32.totalorder %v804, %v885
      %vm901 = vcmp.eq.s32.totalorder %v805, %v885
      %v902 = vsel %vm886, %v694, 0.0
      %v903 = vsel %vm887, %v697, 0.0
      %v904 = vsel %vm888, %v700, 0.0
      %v905 = vsel %vm889, %v703, 0.0
      %v906 = vsel %vm890, %v706, 0.0
      %v907 = vsel %vm891, %v709, 0.0
      %v908 = vsel %vm892, %v712, 0.0
      %v909 = vsel %vm893, %v715, 0.0
      %v910 = vsel %vm894, %v718, 0.0
      %v911 = vsel %vm895, %v721, 0.0
      %v912 = vsel %vm896, %v724, 0.0
      %v913 = vsel %vm897, %v727, 0.0
      %v914 = vsel %vm898, %v730, 0.0
      %v915 = vsel %vm899, %v733, 0.0
      %v916 = vsel %vm900, %v736, 0.0
      %v917 = vsel %vm901, %v739, 0.0
      %v918 = vadd.f32 %v902, %v903
      %v919 = vadd.f32 %v918, %v904
      %v920 = vadd.f32 %v919, %v905
      %v921 = vadd.f32 %v920, %v906
      %v922 = vadd.f32 %v921, %v907
      %v923 = vadd.f32 %v922, %v908
      %v924 = vadd.f32 %v923, %v909
      %v925 = vadd.f32 %v924, %v910
      %v926 = vadd.f32 %v925, %v911
      %v927 = vadd.f32 %v926, %v912
      %v928 = vadd.f32 %v927, %v913
      %v929 = vadd.f32 %v928, %v914
      %v930 = vadd.f32 %v929, %v915
      %v931 = vadd.f32 %v930, %v916
      %v932 = vadd.f32 %v931, %v917
      %v933 = vrot.slane %v932, 4
      %v934 = vadd.f32 %v932, %v933
      %v935 = vrot.slane %v934, 2
      %v936 = vadd.f32 %v934, %v935
      %v937 = vrot.slane %v936, 1
      %v938 = vadd.f32 %v936, %v937
      %939 = vst [vmem:[#allocation3] sm:$0x1] %v938
    $region17: #{tpu_custom_call.1} parent=1 // pred_fallthru
      _
    // Predicated region
    $region18: #{tpu_custom_call.1} parent=1 // pred_check
      %p940 = pneg %p12
    $region19: #{tpu_custom_call.1} parent=1 // pred_check_branch
      %942 = sbr.rel (%p940) target = $region21
    $region20: #{tpu_custom_call.1} parent=1 // pred_region
      %v943 = vld [vmem:[#allocation2] sm:$0x1]
      %v944 = vlog2.pop %v943
      %v945 = vmul.f32 %v944, 0.6931472
      %v946 = vadd.f32 %v945, 14.285714
      %v947 = vld [vmem:[#allocation3] sm:$0x1]
      %v948 = vsub.f32 %v946, %v947
      %949 = vst [vmem:[#allocation5] sm:$0x1] %v948
    $region21: #{tpu_custom_call.1} parent=1 // pred_fallthru
      _
    // Predicated region
    $region22: #{tpu_custom_call.1} parent=1 // pred_check
      _
    $region23: #{tpu_custom_call.1} parent=1 // pred_check_branch
      %951 = sbr.rel (0) target = $region25
    $region24: #{tpu_custom_call.1} parent=1 // pred_region
      %953 = vsyncadd [#allocation6], 0
      %s955 = sshll.u32 [#allocation5], 4
      %s956 = int_to_ptr.vmem [resolvable:$true] %s955
      %s957 = sshll.u32 %s2, 4
      %s958 = int_to_ptr.hbm [resolvable:$true] %s957
      %960 = dma.vmem_to_hbm [thread:$0]  %s956, 16, %s958, [#allocation6]
    $region25: #{tpu_custom_call.1} parent=1 // pred_fallthru
      _
    // Predicated region
    $region26: #{tpu_custom_call.1} parent=1 // pred_check
      _
    $region27: #{tpu_custom_call.1} parent=1 // pred_check_branch
      %962 = sbr.rel (0) target = $region29
    $region28: #{tpu_custom_call.1} parent=1 // pred_region
      %964 = dma.done [#allocation6], 16
    $region29: #{tpu_custom_call.1} parent=1 // pred_fallthru
      _
    %965 = vsyncpa [#allocation6], 1

</llo_original>
